<compile_context>
chip_gen: v7x
topology: tpu7x:2x2x1
jax: 0.10.0
libtpu: 0.0.40
codegen_flags: <defaults>
</compile_context>

<pallas_src>
import functools

import jax
import jax.numpy as jnp
from jax.experimental import pallas as pl
from jax.experimental.pallas import tpu as pltpu

# ----------------------------------------------------------------------------
# Scaled-down configuration consistent with the module structure.
# ----------------------------------------------------------------------------
CFG = dict(
    batch=2, n_patch=8,
    hist_dim=36, hist_proj=32,          # AttentionPooling(in_dim, proj_dim)
    hid=32,                             # stand-in for the hard-coded 1024 width
    hist_feat=16,
    rna_dim=256, rna_b1=64, rna_b2=32,  # rna bottleneck widths (4096/2048 analogues)
    rna_feat=32,
    clin_dim=13, clin_hid=16,           # clinical hidden (256 analogue)
    clin_feat=8,
)

BN_EPS = 1e-5
LN_EPS = 1e-5


# ----------------------------------------------------------------------------
# Fused kernel: whole encoder forward in one invocation (no grid).
# ----------------------------------------------------------------------------
def _encoder_kernel(hist_ref, rna_ref, clin_ref,
                    wp_ref, rb1w_ref, rb2w_ref, w1_ref, wres_ref, wout_ref,
                    vec_ref, o_ref, *, batch, n_patch, dims):
    P = dims['hist_proj']
    HID = dims['hid']
    CH = dims['clin_hid']
    B1 = dims['rna_b1']
    B2 = dims['rna_b2']
    OUT = dims['out_dim']
    RELU_LANES = dims['hist_feat'] + dims['rna_feat']   # clinical head has no ReLU
    W1_OUT = 2 * HID + CH

    def mm(x, w):
        # bf16 MXU operands, f32 accumulation; epilogues stay in f32.
        return jnp.dot(x.astype(jnp.bfloat16), w,
                       preferred_element_type=jnp.float32)

    # ---------------- Attention pooling --------------------------------------
    bp = vec_ref[0:1, 0:P]
    lng = vec_ref[1:2, 0:P]
    lnb = vec_ref[2:3, 0:P]
    wa = vec_ref[3:4, 0:P]

    xp = mm(hist_ref[...], wp_ref[...]) + bp                        # (B*N, P) f32
    mu = jnp.mean(xp, axis=-1, keepdims=True)
    var = jnp.mean(jnp.square(xp - mu), axis=-1, keepdims=True)
    hpre = jnp.maximum((xp - mu) * jax.lax.rsqrt(var + LN_EPS) * lng + lnb, 0.0)
    # Width-1 attention Linear as a VPU multiply + lane reduce (no MXU trip).
    # Constant attention bias dropped: shift-invariant under softmax.
    logits = jnp.sum(hpre * wa, axis=-1, keepdims=True)             # (B*N, 1) f32

    # Vectorized per-sample softmax over patches + weighted pooling.
    # n_patch == 8 keeps the (B*N, P) -> (B, N, P) split sublane-tile aligned.
    xp3 = xp.reshape(batch, n_patch, P)
    lg3 = logits.reshape(batch, n_patch, 1)
    m = jnp.max(lg3, axis=1, keepdims=True)
    e = jnp.exp(lg3 - m)
    attn = e / jnp.sum(e, axis=1, keepdims=True)                    # exact divide
    pooled = jnp.sum(attn * xp3, axis=1)                            # (B, P) f32

    # ---------------- RNA bottleneck ------------------------------------------
    r = jnp.maximum(mm(rna_ref[...], rb1w_ref[...]) + vec_ref[4:5, 0:B1], 0.0)
    r = jnp.maximum(mm(r, rb2w_ref[...]) + vec_ref[5:6, 0:B2], 0.0)

    # ---------------- Fused first layer of all three branches (block-diag) ----
    u0 = jnp.concatenate([pooled, r, clin_ref[...]], axis=-1)       # (B, P+B2+clin)
    y = jnp.maximum(mm(u0, w1_ref[...]) + vec_ref[6:7, 0:W1_OUT], 0.0)
    hr = y[:, 0:2 * HID]                                            # hist | rna hidden
    ch = y[:, 2 * HID:W1_OUT]                                       # clinical hidden

    # ---------------- Fused residual blocks (hist + rna share shape) ----------
    t = jnp.maximum(mm(hr, wres_ref[0:2 * HID, :])
                    + vec_ref[7:8, 0:2 * HID], 0.0)
    hr = jnp.maximum(mm(t, wres_ref[2 * HID:4 * HID, :])
                     + vec_ref[8:9, 0:2 * HID] + hr, 0.0)

    # ---------------- Fused head projections + concatenated lane-dense store --
    u1 = jnp.concatenate([hr, ch], axis=-1)                         # (B, 2*HID+CH)
    out = mm(u1, wout_ref[...]) + vec_ref[9:10, 0:OUT]              # (B, OUT)
    lane = jax.lax.broadcasted_iota(jnp.int32, out.shape, 1)
    out = jnp.where(lane < RELU_LANES, jnp.maximum(out, 0.0), out)
    o_ref[...] = out


# ----------------------------------------------------------------------------
# Parameter preparation: fold eval-mode BatchNorm, pack block-diagonal weights
# (bf16) and one lane-dense f32 vector slab.
# ----------------------------------------------------------------------------
def prepare_params(params):
    def fold(p, bn=None):
        w, b = p['w'].astype(jnp.float32), p['b'].astype(jnp.float32)
        if bn is not None:
            scale = bn['gamma'] * jax.lax.rsqrt(bn['var'] + BN_EPS)
            shift = bn['beta'] - bn['mean'] * scale
            w = w * scale[None, :]
            b = b * scale + shift
        return w, b

    def blockdiag(*ws):
        kt = sum(w.shape[0] for w in ws)
        nt = sum(w.shape[1] for w in ws)
        out = jnp.zeros((kt, nt), jnp.float32)
        ko = no = 0
        for w in ws:
            out = out.at[ko:ko + w.shape[0], no:no + w.shape[1]].set(w)
            ko += w.shape[0]
            no += w.shape[1]
        return out

    ap = params['attn_pool']
    wp, bp = fold(ap['proj'])
    wa = ap['attn']['w'][:, 0].astype(jnp.float32)   # attn bias dropped (softmax shift-invariant)

    def enc(pe):
        w1, b1 = fold(pe['lin1'], pe['bn1'])
        rs = pe['res']
        wr1, br1 = fold(rs['lin1'], rs['bn1'])
        wr2, br2 = fold(rs['lin2'], rs['bn2'])
        w2, b2 = fold(pe['lin2'])
        return w1, b1, wr1, br1, wr2, br2, w2, b2

    h1w, h1b, hr1w, hr1b, hr2w, hr2b, h2w, h2b = enc(params['hist'])
    r1w, r1b, rr1w, rr1b, rr2w, rr2b, r2w, r2b = enc(params['rna_enc'])

    pb = params['rna_bottleneck']
    rb1w, rb1b = fold(pb['lin1'])
    rb2w, rb2b = fold(pb['lin2'])

    pc = params['clin']
    c1w, c1b = fold(pc['lin1'], pc['bn1'])
    c2w, c2b = fold(pc['lin2'])

    # Block-diagonal packing of independent same-M branch matmuls.
    w1 = blockdiag(h1w, r1w, c1w)                               # (77, 80)
    wres = jnp.concatenate([blockdiag(hr1w, rr1w),
                            blockdiag(hr2w, rr2w)], axis=0)     # (128, 64)
    wout = blockdiag(h2w, r2w, c2w)                             # (80, 56)

    # Every (dout,) vector packed into one lane-dense f32 slab (rows sliced
    # with static offsets inside the kernel).
    rows = [bp, ap['ln_g'].astype(jnp.float32), ap['ln_b'].astype(jnp.float32), wa,
            rb1b, rb2b,
            jnp.concatenate([h1b, r1b, c1b]),
            jnp.concatenate([hr1b, rr1b]),
            jnp.concatenate([hr2b, rr2b]),
            jnp.concatenate([h2b, r2b, c2b])]
    width = max(int(r.shape[0]) for r in rows)
    vec = jnp.stack([jnp.pad(r, (0, width - int(r.shape[0]))) for r in rows])

    bf16 = lambda w: w.astype(jnp.bfloat16)
    prep = dict(wp=bf16(wp), rb1w=bf16(rb1w), rb2w=bf16(rb2w),
                w1=bf16(w1), wres=bf16(wres), wout=bf16(wout),
                vec=vec.astype(jnp.float32))

    dims = dict(
        hist_proj=int(wp.shape[1]),
        hid=int(h1w.shape[1]),
        clin_hid=int(c1w.shape[1]),
        rna_b1=int(rb1w.shape[1]),
        rna_b2=int(rb2w.shape[1]),
        hist_feat=int(h2w.shape[1]),
        rna_feat=int(r2w.shape[1]),
        clin_feat=int(c2w.shape[1]),
        out_dim=int(h2w.shape[1] + r2w.shape[1] + c2w.shape[1]),
    )
    return prep, dims


# ----------------------------------------------------------------------------
# Forward wrapper: one grid-less pallas_call, everything resident in VMEM.
# ----------------------------------------------------------------------------
def baseline_encoder_forward(prep, hist_patches, rna_vec, clinical_vec, *, dims):
    # TODO(synk): training-mode Dropout / batch-statistic BatchNorm are not
    # implemented; eval-mode semantics only (identity dropout, running-stat BN).
    B, N, D = hist_patches.shape
    hist2d = hist_patches.reshape(B * N, D)

    args = [hist2d, rna_vec, clinical_vec,
            prep['wp'], prep['rb1w'], prep['rb2w'],
            prep['w1'], prep['wres'], prep['wout'], prep['vec']]

    kernel = functools.partial(_encoder_kernel, batch=B, n_patch=N, dims=dims)
    return pl.pallas_call(
        kernel,
        out_shape=jax.ShapeDtypeStruct((B, dims['out_dim']), jnp.float32),
        in_specs=[pl.BlockSpec(memory_space=pltpu.MemorySpace.VMEM)] * len(args),
        out_specs=pl.BlockSpec(memory_space=pltpu.MemorySpace.VMEM),
    )(*args)


# ----------------------------------------------------------------------------
# Parameters (deterministic synthetic init)
# ----------------------------------------------------------------------------
def make_linear(key, din, dout):
    k1, k2 = jax.random.split(key)
    w = jax.random.normal(k1, (din, dout), jnp.float32) * (float(din) ** -0.5)
    b = 0.01 * jax.random.normal(k2, (dout,), jnp.float32)
    return {'w': w, 'b': b}


def make_bn(key, dim):
    k1, k2, k3, k4 = jax.random.split(key, 4)
    return {
        'gamma': 1.0 + 0.1 * jax.random.normal(k1, (dim,), jnp.float32),
        'beta': 0.1 * jax.random.normal(k2, (dim,), jnp.float32),
        'mean': 0.1 * jax.random.normal(k3, (dim,), jnp.float32),
        'var': 0.5 + jax.random.uniform(k4, (dim,), jnp.float32),
    }


def make_resblock(key, dim):
    k1, k2, k3, k4 = jax.random.split(key, 4)
    return {'lin1': make_linear(k1, dim, dim), 'bn1': make_bn(k2, dim),
            'lin2': make_linear(k3, dim, dim), 'bn2': make_bn(k4, dim)}


def init_params(key, cfg):
    keys = iter(jax.random.split(key, 32))
    nk = lambda: next(keys)
    return {
        'attn_pool': {
            'proj': make_linear(nk(), cfg['hist_dim'], cfg['hist_proj']),
            'ln_g': 1.0 + 0.1 * jax.random.normal(nk(), (cfg['hist_proj'],), jnp.float32),
            'ln_b': 0.1 * jax.random.normal(nk(), (cfg['hist_proj'],), jnp.float32),
            'attn': make_linear(nk(), cfg['hist_proj'], 1),
        },
        'hist': {
            'lin1': make_linear(nk(), cfg['hist_proj'], cfg['hid']),
            'bn1': make_bn(nk(), cfg['hid']),
            'res': make_resblock(nk(), cfg['hid']),
            'lin2': make_linear(nk(), cfg['hid'], cfg['hist_feat']),
        },
        'rna_bottleneck': {
            'lin1': make_linear(nk(), cfg['rna_dim'], cfg['rna_b1']),
            'lin2': make_linear(nk(), cfg['rna_b1'], cfg['rna_b2']),
        },
        'rna_enc': {
            'lin1': make_linear(nk(), cfg['rna_b2'], cfg['hid']),
            'bn1': make_bn(nk(), cfg['hid']),
            'res': make_resblock(nk(), cfg['hid']),
            'lin2': make_linear(nk(), cfg['hid'], cfg['rna_feat']),
        },
        'clin': {
            'lin1': make_linear(nk(), cfg['clin_dim'], cfg['clin_hid']),
            'bn1': make_bn(nk(), cfg['clin_hid']),
            'lin2': make_linear(nk(), cfg['clin_hid'], cfg['clin_feat']),
        },
    }


# ----------------------------------------------------------------------------
# Pure-JAX f32 reference (eval-mode semantics, unfused BN) for validation
# ----------------------------------------------------------------------------
def _ref_lin(x, p, bn=None, relu=False, res=None):
    y = jnp.dot(x, p['w'], precision=jax.lax.Precision.HIGHEST) + p['b']
    if bn is not None:
        y = (y - bn['mean']) / jnp.sqrt(bn['var'] + BN_EPS) * bn['gamma'] + bn['beta']
    if res is not None:
        y = y + res
    if relu:
        y = jnp.maximum(y, 0.0)
    return y


def reference_forward(params, hist, rna, clin):
    ap = params['attn_pool']
    xp = jnp.dot(hist, ap['proj']['w'], precision=jax.lax.Precision.HIGHEST) + ap['proj']['b']
    mu = xp.mean(-1, keepdims=True)
    var = ((xp - mu) ** 2).mean(-1, keepdims=True)
    xn = (xp - mu) / jnp.sqrt(var + LN_EPS) * ap['ln_g'] + ap['ln_b']
    h = jnp.maximum(xn, 0.0)
    logits = (jnp.dot(h, ap['attn']['w'], precision=jax.lax.Precision.HIGHEST)
              + ap['attn']['b'])[..., 0]
    w = jax.nn.softmax(logits, axis=1)[..., None]
    pooled = jnp.sum(w * xp, axis=1)

    def resblk(x, p):
        t = _ref_lin(x, p['lin1'], bn=p['bn1'], relu=True)
        return _ref_lin(t, p['lin2'], bn=p['bn2'], res=x, relu=True)

    pe = params['hist']
    hh = _ref_lin(pooled, pe['lin1'], bn=pe['bn1'], relu=True)
    hh = resblk(hh, pe['res'])
    hist_repr = _ref_lin(hh, pe['lin2'], relu=True)

    pb = params['rna_bottleneck']
    r = _ref_lin(rna, pb['lin1'], relu=True)
    r = _ref_lin(r, pb['lin2'], relu=True)
    pr = params['rna_enc']
    r = _ref_lin(r, pr['lin1'], bn=pr['bn1'], relu=True)
    r = resblk(r, pr['res'])
    rna_repr = _ref_lin(r, pr['lin2'], relu=True)

    pc = params['clin']
    c = _ref_lin(clin, pc['lin1'], bn=pc['bn1'], relu=True)
    clin_repr = _ref_lin(c, pc['lin2'])

    return jnp.concatenate([hist_repr, rna_repr, clin_repr], axis=1)


# ----------------------------------------------------------------------------
if __name__ == "__main__":
    key = jax.random.PRNGKey(0)
    kp, kh, kr, kc = jax.random.split(key, 4)
    params = init_params(kp, CFG)
    prep, dims = prepare_params(params)        # BN folded + weights packed once

    hist_patches = jax.random.normal(
        kh, (CFG['batch'], CFG['n_patch'], CFG['hist_dim']), jnp.float32)
    rna_vec = jax.random.normal(kr, (CFG['batch'], CFG['rna_dim']), jnp.float32)
    clinical_vec = jax.random.normal(kc, (CFG['batch'], CFG['clin_dim']), jnp.float32)

    fwd = jax.jit(functools.partial(baseline_encoder_forward, dims=dims))
    out = jax.block_until_ready(fwd(prep, hist_patches, rna_vec, clinical_vec))

    assert out.shape == (CFG['batch'], dims['out_dim']), out.shape

    ref = reference_forward(params, hist_patches, rna_vec, clinical_vec)
    # bf16 MXU operands (f32 accumulation) vs. the all-f32 reference.
    assert jnp.allclose(out, ref, rtol=5e-2, atol=5e-2), (
        float(jnp.max(jnp.abs(out - ref))))

    print("KERNEL_OK")
</pallas_src>

<mosaic_0001>
module attributes {stable_mosaic.version = 11 : i64} {
  func.func @_encoder_kernel(%arg0: memref<16x36xf32, #tpu.memory_space<vmem>>, %arg1: memref<2x256xf32, #tpu.memory_space<vmem>>, %arg2: memref<2x13xf32, #tpu.memory_space<vmem>>, %arg3: memref<36x32xbf16, #tpu.memory_space<vmem>>, %arg4: memref<256x64xbf16, #tpu.memory_space<vmem>>, %arg5: memref<64x32xbf16, #tpu.memory_space<vmem>>, %arg6: memref<77x80xbf16, #tpu.memory_space<vmem>>, %arg7: memref<128x64xbf16, #tpu.memory_space<vmem>>, %arg8: memref<80x56xbf16, #tpu.memory_space<vmem>>, %arg9: memref<10x80xf32, #tpu.memory_space<vmem>>, %arg10: memref<2x56xf32, #tpu.memory_space<vmem>>) attributes {dimension_semantics = [], scalar_prefetch = 0 : i64, scratch_operands = 0 : i64, tpu.core_type = #tpu.core_type<tc>} {
    %c0 = arith.constant 0 : index
    %c0_0 = arith.constant 0 : index
    %0 = vector.load %arg9[%c0, %c0_0] : memref<10x80xf32, #tpu.memory_space<vmem>>, vector<1x32xf32>
    %c1 = arith.constant 1 : index
    %c0_1 = arith.constant 0 : index
    %1 = vector.load %arg9[%c1, %c0_1] : memref<10x80xf32, #tpu.memory_space<vmem>>, vector<1x32xf32>
    %c2 = arith.constant 2 : index
    %c0_2 = arith.constant 0 : index
    %2 = vector.load %arg9[%c2, %c0_2] : memref<10x80xf32, #tpu.memory_space<vmem>>, vector<1x32xf32>
    %c3 = arith.constant 3 : index
    %c0_3 = arith.constant 0 : index
    %3 = vector.load %arg9[%c3, %c0_3] : memref<10x80xf32, #tpu.memory_space<vmem>>, vector<1x32xf32>
    %c0_4 = arith.constant 0 : index
    %c0_5 = arith.constant 0 : index
    %4 = vector.load %arg0[%c0_4, %c0_5] : memref<16x36xf32, #tpu.memory_space<vmem>>, vector<16x36xf32>
    %c0_6 = arith.constant 0 : index
    %c0_7 = arith.constant 0 : index
    %5 = vector.load %arg3[%c0_6, %c0_7] : memref<36x32xbf16, #tpu.memory_space<vmem>>, vector<36x32xbf16>
    %6 = arith.truncf %4 : vector<16x36xf32> to vector<16x36xbf16>
    %cst = arith.constant dense<0.000000e+00> : vector<16x32xf32>
    %7 = tpu.matmul %6, %5, %cst {dimension_numbers = #tpu.dot_dimension_numbers<[1], [0], [0], [1], [0, 0, 1, 1], [], []>} : vector<16x36xbf16>, vector<36x32xbf16>, vector<16x32xf32> -> vector<16x32xf32>
    %8 = vector.broadcast %0 : vector<1x32xf32> to vector<16x32xf32>
    %9 = arith.addf %7, %8 : vector<16x32xf32>
    %cst_8 = arith.constant dense<0.000000e+00> : vector<16xf32>
    %10 = vector.multi_reduction <add>, %9, %cst_8 [1] : vector<16x32xf32> to vector<16xf32>
    %11 = vector.shape_cast %10 : vector<16xf32> to vector<16x1xf32>
    %cst_9 = arith.constant 3.200000e+01 : f32
    %12 = vector.broadcast %cst_9 : f32 to vector<16x1xf32>
    %13 = arith.divf %11, %12 : vector<16x1xf32>
    %14 = vector.broadcast %13 : vector<16x1xf32> to vector<16x32xf32>
    %15 = arith.subf %9, %14 : vector<16x32xf32>
    %16 = arith.mulf %15, %15 : vector<16x32xf32>
    %cst_10 = arith.constant dense<0.000000e+00> : vector<16xf32>
    %17 = vector.multi_reduction <add>, %16, %cst_10 [1] : vector<16x32xf32> to vector<16xf32>
    %18 = vector.shape_cast %17 : vector<16xf32> to vector<16x1xf32>
    %cst_11 = arith.constant 3.200000e+01 : f32
    %19 = vector.broadcast %cst_11 : f32 to vector<16x1xf32>
    %20 = arith.divf %18, %19 : vector<16x1xf32>
    %21 = vector.broadcast %13 : vector<16x1xf32> to vector<16x32xf32>
    %22 = arith.subf %9, %21 : vector<16x32xf32>
    %cst_12 = arith.constant 9.99999974E-6 : f32
    %23 = vector.broadcast %cst_12 : f32 to vector<16x1xf32>
    %24 = arith.addf %20, %23 : vector<16x1xf32>
    %25 = math.rsqrt %24 : vector<16x1xf32>
    %26 = vector.broadcast %25 : vector<16x1xf32> to vector<16x32xf32>
    %27 = arith.mulf %22, %26 : vector<16x32xf32>
    %28 = vector.broadcast %1 : vector<1x32xf32> to vector<16x32xf32>
    %29 = arith.mulf %27, %28 : vector<16x32xf32>
    %30 = vector.broadcast %2 : vector<1x32xf32> to vector<16x32xf32>
    %31 = arith.addf %29, %30 : vector<16x32xf32>
    %cst_13 = arith.constant 0.000000e+00 : f32
    %32 = vector.broadcast %cst_13 : f32 to vector<16x32xf32>
    %33 = arith.maximumf %31, %32 : vector<16x32xf32>
    %34 = vector.broadcast %3 : vector<1x32xf32> to vector<16x32xf32>
    %35 = arith.mulf %33, %34 : vector<16x32xf32>
    %cst_14 = arith.constant dense<0.000000e+00> : vector<16xf32>
    %36 = vector.multi_reduction <add>, %35, %cst_14 [1] : vector<16x32xf32> to vector<16xf32>
    %37 = vector.shape_cast %36 : vector<16xf32> to vector<16x1xf32>
    %38 = vector.shape_cast %9 : vector<16x32xf32> to vector<2x8x32xf32>
    %39 = vector.shape_cast %37 : vector<16x1xf32> to vector<2x8x1xf32>
    %cst_15 = arith.constant dense<0xFF800000> : vector<2x1xf32>
    %40 = vector.multi_reduction <maximumf>, %39, %cst_15 [1] : vector<2x8x1xf32> to vector<2x1xf32>
    %41 = vector.shape_cast %40 : vector<2x1xf32> to vector<2x1x1xf32>
    %42 = vector.broadcast %41 : vector<2x1x1xf32> to vector<2x8x1xf32>
    %43 = arith.subf %39, %42 : vector<2x8x1xf32>
    %44 = math.exp %43 : vector<2x8x1xf32>
    %cst_16 = arith.constant dense<0.000000e+00> : vector<2x1xf32>
    %45 = vector.multi_reduction <add>, %44, %cst_16 [1] : vector<2x8x1xf32> to vector<2x1xf32>
    %46 = vector.shape_cast %45 : vector<2x1xf32> to vector<2x1x1xf32>
    %47 = vector.broadcast %46 : vector<2x1x1xf32> to vector<2x8x1xf32>
    %48 = arith.divf %44, %47 : vector<2x8x1xf32>
    %49 = vector.broadcast %48 : vector<2x8x1xf32> to vector<2x8x32xf32>
    %50 = arith.mulf %49, %38 : vector<2x8x32xf32>
    %cst_17 = arith.constant dense<0.000000e+00> : vector<2x32xf32>
    %51 = vector.multi_reduction <add>, %50, %cst_17 [1] : vector<2x8x32xf32> to vector<2x32xf32>
    %c0_18 = arith.constant 0 : index
    %c0_19 = arith.constant 0 : index
    %52 = vector.load %arg1[%c0_18, %c0_19] : memref<2x256xf32, #tpu.memory_space<vmem>>, vector<2x256xf32>
    %c0_20 = arith.constant 0 : index
    %c0_21 = arith.constant 0 : index
    %53 = vector.load %arg4[%c0_20, %c0_21] : memref<256x64xbf16, #tpu.memory_space<vmem>>, vector<256x64xbf16>
    %54 = arith.truncf %52 : vector<2x256xf32> to vector<2x256xbf16>
    %cst_22 = arith.constant dense<0.000000e+00> : vector<2x64xf32>
    %55 = tpu.matmul %54, %53, %cst_22 {dimension_numbers = #tpu.dot_dimension_numbers<[1], [0], [0], [1], [0, 0, 1, 1], [], []>} : vector<2x256xbf16>, vector<256x64xbf16>, vector<2x64xf32> -> vector<2x64xf32>
    %c4 = arith.constant 4 : index
    %c0_23 = arith.constant 0 : index
    %56 = vector.load %arg9[%c4, %c0_23] : memref<10x80xf32, #tpu.memory_space<vmem>>, vector<1x64xf32>
    %57 = vector.broadcast %56 : vector<1x64xf32> to vector<2x64xf32>
    %58 = arith.addf %55, %57 : vector<2x64xf32>
    %cst_24 = arith.constant 0.000000e+00 : f32
    %59 = vector.broadcast %cst_24 : f32 to vector<2x64xf32>
    %60 = arith.maximumf %58, %59 : vector<2x64xf32>
    %c0_25 = arith.constant 0 : index
    %c0_26 = arith.constant 0 : index
    %61 = vector.load %arg5[%c0_25, %c0_26] : memref<64x32xbf16, #tpu.memory_space<vmem>>, vector<64x32xbf16>
    %62 = arith.truncf %60 : vector<2x64xf32> to vector<2x64xbf16>
    %cst_27 = arith.constant dense<0.000000e+00> : vector<2x32xf32>
    %63 = tpu.matmul %62, %61, %cst_27 {dimension_numbers = #tpu.dot_dimension_numbers<[1], [0], [0], [1], [0, 0, 1, 1], [], []>} : vector<2x64xbf16>, vector<64x32xbf16>, vector<2x32xf32> -> vector<2x32xf32>
    %c5 = arith.constant 5 : index
    %c0_28 = arith.constant 0 : index
    %64 = vector.load %arg9[%c5, %c0_28] : memref<10x80xf32, #tpu.memory_space<vmem>>, vector<1x32xf32>
    %65 = vector.broadcast %64 : vector<1x32xf32> to vector<2x32xf32>
    %66 = arith.addf %63, %65 : vector<2x32xf32>
    %cst_29 = arith.constant 0.000000e+00 : f32
    %67 = vector.broadcast %cst_29 : f32 to vector<2x32xf32>
    %68 = arith.maximumf %66, %67 : vector<2x32xf32>
    %c0_30 = arith.constant 0 : index
    %c0_31 = arith.constant 0 : index
    %69 = vector.load %arg2[%c0_30, %c0_31] : memref<2x13xf32, #tpu.memory_space<vmem>>, vector<2x13xf32>
    %70 = tpu.concatenate %51, %68, %69 in 1 : vector<2x32xf32>, vector<2x32xf32>, vector<2x13xf32> -> vector<2x77xf32>
    %c0_32 = arith.constant 0 : index
    %c0_33 = arith.constant 0 : index
    %71 = vector.load %arg6[%c0_32, %c0_33] : memref<77x80xbf16, #tpu.memory_space<vmem>>, vector<77x80xbf16>
    %72 = arith.truncf %70 : vector<2x77xf32> to vector<2x77xbf16>
    %cst_34 = arith.constant dense<0.000000e+00> : vector<2x80xf32>
    %73 = tpu.matmul %72, %71, %cst_34 {dimension_numbers = #tpu.dot_dimension_numbers<[1], [0], [0], [1], [0, 0, 1, 1], [], []>} : vector<2x77xbf16>, vector<77x80xbf16>, vector<2x80xf32> -> vector<2x80xf32>
    %c6 = arith.constant 6 : index
    %c0_35 = arith.constant 0 : index
    %74 = vector.load %arg9[%c6, %c0_35] : memref<10x80xf32, #tpu.memory_space<vmem>>, vector<1x80xf32>
    %75 = vector.broadcast %74 : vector<1x80xf32> to vector<2x80xf32>
    %76 = arith.addf %73, %75 : vector<2x80xf32>
    %cst_36 = arith.constant 0.000000e+00 : f32
    %77 = vector.broadcast %cst_36 : f32 to vector<2x80xf32>
    %78 = arith.maximumf %76, %77 : vector<2x80xf32>
    %79 = vector.extract_strided_slice %78 {offsets = [0, 0], sizes = [2, 64], strides = [1, 1]} : vector<2x80xf32> to vector<2x64xf32>
    %80 = vector.extract_strided_slice %78 {offsets = [0, 64], sizes = [2, 16], strides = [1, 1]} : vector<2x80xf32> to vector<2x16xf32>
    %c0_37 = arith.constant 0 : index
    %c0_38 = arith.constant 0 : index
    %81 = vector.load %arg7[%c0_37, %c0_38] : memref<128x64xbf16, #tpu.memory_space<vmem>>, vector<64x64xbf16>
    %82 = arith.truncf %79 : vector<2x64xf32> to vector<2x64xbf16>
    %cst_39 = arith.constant dense<0.000000e+00> : vector<2x64xf32>
    %83 = tpu.matmul %82, %81, %cst_39 {dimension_numbers = #tpu.dot_dimension_numbers<[1], [0], [0], [1], [0, 0, 1, 1], [], []>} : vector<2x64xbf16>, vector<64x64xbf16>, vector<2x64xf32> -> vector<2x64xf32>
    %c7 = arith.constant 7 : index
    %c0_40 = arith.constant 0 : index
    %84 = vector.load %arg9[%c7, %c0_40] : memref<10x80xf32, #tpu.memory_space<vmem>>, vector<1x64xf32>
    %85 = vector.broadcast %84 : vector<1x64xf32> to vector<2x64xf32>
    %86 = arith.addf %83, %85 : vector<2x64xf32>
    %cst_41 = arith.constant 0.000000e+00 : f32
    %87 = vector.broadcast %cst_41 : f32 to vector<2x64xf32>
    %88 = arith.maximumf %86, %87 : vector<2x64xf32>
    %c64 = arith.constant 64 : index
    %c0_42 = arith.constant 0 : index
    %89 = vector.load %arg7[%c64, %c0_42] : memref<128x64xbf16, #tpu.memory_space<vmem>>, vector<64x64xbf16>
    %90 = arith.truncf %88 : vector<2x64xf32> to vector<2x64xbf16>
    %cst_43 = arith.constant dense<0.000000e+00> : vector<2x64xf32>
    %91 = tpu.matmul %90, %89, %cst_43 {dimension_numbers = #tpu.dot_dimension_numbers<[1], [0], [0], [1], [0, 0, 1, 1], [], []>} : vector<2x64xbf16>, vector<64x64xbf16>, vector<2x64xf32> -> vector<2x64xf32>
    %c8 = arith.constant 8 : index
    %c0_44 = arith.constant 0 : index
    %92 = vector.load %arg9[%c8, %c0_44] : memref<10x80xf32, #tpu.memory_space<vmem>>, vector<1x64xf32>
    %93 = vector.broadcast %92 : vector<1x64xf32> to vector<2x64xf32>
    %94 = arith.addf %91, %93 : vector<2x64xf32>
    %95 = arith.addf %94, %79 : vector<2x64xf32>
    %cst_45 = arith.constant 0.000000e+00 : f32
    %96 = vector.broadcast %cst_45 : f32 to vector<2x64xf32>
    %97 = arith.maximumf %95, %96 : vector<2x64xf32>
    %98 = tpu.concatenate %97, %80 in 1 : vector<2x64xf32>, vector<2x16xf32> -> vector<2x80xf32>
    %c0_46 = arith.constant 0 : index
    %c0_47 = arith.constant 0 : index
    %99 = vector.load %arg8[%c0_46, %c0_47] : memref<80x56xbf16, #tpu.memory_space<vmem>>, vector<80x56xbf16>
    %100 = arith.truncf %98 : vector<2x80xf32> to vector<2x80xbf16>
    %cst_48 = arith.constant dense<0.000000e+00> : vector<2x56xf32>
    %101 = tpu.matmul %100, %99, %cst_48 {dimension_numbers = #tpu.dot_dimension_numbers<[1], [0], [0], [1], [0, 0, 1, 1], [], []>} : vector<2x80xbf16>, vector<80x56xbf16>, vector<2x56xf32> -> vector<2x56xf32>
    %c9 = arith.constant 9 : index
    %c0_49 = arith.constant 0 : index
    %102 = vector.load %arg9[%c9, %c0_49] : memref<10x80xf32, #tpu.memory_space<vmem>>, vector<1x56xf32>
    %103 = vector.broadcast %102 : vector<1x56xf32> to vector<2x56xf32>
    %104 = arith.addf %101, %103 : vector<2x56xf32>
    %105 = tpu.iota {dimensions = array<i32: 1>} : vector<2x56xi32>
    %c48_i32 = arith.constant 48 : i32
    %106 = vector.broadcast %c48_i32 : i32 to vector<2x56xi32>
    %107 = arith.cmpi slt, %105, %106 : vector<2x56xi32>
    %cst_50 = arith.constant 0.000000e+00 : f32
    %108 = vector.broadcast %cst_50 : f32 to vector<2x56xf32>
    %109 = arith.maximumf %104, %108 : vector<2x56xf32>
    %110 = arith.select %107, %109, %104 : vector<2x56xi1>, vector<2x56xf32>
    %c0_51 = arith.constant 0 : index
    %c0_52 = arith.constant 0 : index
    %111 = vector.load %arg10[%c0_51, %c0_52] : memref<2x56xf32, #tpu.memory_space<vmem>>, vector<2x56xf32>
    tpu.vector_store %arg10[%c0_51, %c0_52], %110 {strides = array<i32>} : memref<2x56xf32, #tpu.memory_space<vmem>>, vector<2x56xf32>,
    return
  }
}

</mosaic_0001>

<llo_original>
// kernel: baseline_encoder_forward.1
$region0: #{baseline_encoder_forward.1}
  #allocation0 [shape = 'u32[]', space=smem, size = 0x4, offset = 0x4, fixed_abs, tag = 'smem constant byte address 0x4 - core index']
  #allocation1 [shape = 'u32[144,128]{1,0:T(1,128)}', space=vmem, size = 0x12000, scoped, tag = 'internal scratch']
  %s0 = inlined_call_operand.vmem [shape: f32[16,36], index: 0, kind: input, shape index: {}]
  %s1 = inlined_call_operand.vmem [shape: f32[2,256], index: 1, kind: input, shape index: {}]
  %s2 = inlined_call_operand.vmem [shape: f32[2,13], index: 2, kind: input, shape index: {}]
  %s3 = inlined_call_operand.vmem [shape: bf16[36,32], index: 3, kind: input, shape index: {}]
  %s4 = inlined_call_operand.vmem [shape: bf16[256,64], index: 4, kind: input, shape index: {}]
  %s5 = inlined_call_operand.vmem [shape: bf16[64,32], index: 5, kind: input, shape index: {}]
  %s6 = inlined_call_operand.vmem [shape: bf16[77,80], index: 6, kind: input, shape index: {}]
  %s7 = inlined_call_operand.vmem [shape: bf16[128,64], index: 7, kind: input, shape index: {}]
  %s8 = inlined_call_operand.vmem [shape: bf16[80,56], index: 8, kind: input, shape index: {}]
  %s9 = inlined_call_operand.vmem [shape: f32[10,80], index: 9, kind: input, shape index: {}]
  %s10 = inlined_call_operand.hbm [shape: f32[2,56], index: 10, kind: output, shape index: {}]
  %s11 = sld [smem:[#allocation0]]
  $region50: #{baseline_encoder_forward.1} parent=0
    _
  %s13 = ssub.s32 1, %s11
  %s14 = scalar_select 0, %s13, %s11
  $region1: #{baseline_encoder_forward.1} parent=0
    #allocation2 [shape = 'u8[1024]{0}', space=vmem, size = 0x400, scoped, tag = 'output window, operand 0, single buffered']
    #allocation3 [shape = 's32[1]{0}', space=sflag, size = 0x4, scoped, tag = 'scoped memory for baseline_encoder_forward.1']
    %15 = vsyncpa [#allocation3], 0
    // Predicated region
    $region2: #{baseline_encoder_forward.1} parent=1 // pred_check
      _
    $region3: #{baseline_encoder_forward.1} parent=1 // pred_check_branch
      %17 = sbr.rel (0) target = $region5
    $region4: #{baseline_encoder_forward.1} parent=1 // pred_region
      _
    $region5: #{baseline_encoder_forward.1} parent=1 // pred_fallthru
      _
    // Predicated region
    $region6: #{baseline_encoder_forward.1} parent=1 // pred_check
      _
    $region7: #{baseline_encoder_forward.1} parent=1 // pred_check_branch
      %19 = sbr.rel (0) target = $region9
    $region8: #{baseline_encoder_forward.1} parent=1 // pred_region
      _
    $region9: #{baseline_encoder_forward.1} parent=1 // pred_fallthru
      _
    // Predicated region
    $region10: #{baseline_encoder_forward.1} parent=1 // pred_check
      _
    $region11: #{baseline_encoder_forward.1} parent=1 // pred_check_branch
      %21 = sbr.rel (0) target = $region13
    $region12: #{baseline_encoder_forward.1} parent=1 // pred_region
      _
    $region13: #{baseline_encoder_forward.1} parent=1 // pred_fallthru
      _
    // Predicated region
    $region14: #{baseline_encoder_forward.1} parent=1 // pred_check
      _
    $region15: #{baseline_encoder_forward.1} parent=1 // pred_check_branch
      %23 = sbr.rel (0) target = $region17
    $region16: #{baseline_encoder_forward.1} parent=1 // pred_region
      _
    $region17: #{baseline_encoder_forward.1} parent=1 // pred_fallthru
      _
    // Predicated region
    $region18: #{baseline_encoder_forward.1} parent=1 // pred_check
      _
    $region19: #{baseline_encoder_forward.1} parent=1 // pred_check_branch
      %25 = sbr.rel (0) target = $region21
    $region20: #{baseline_encoder_forward.1} parent=1 // pred_region
      _
    $region21: #{baseline_encoder_forward.1} parent=1 // pred_fallthru
      _
    // Predicated region
    $region22: #{baseline_encoder_forward.1} parent=1 // pred_check
      _
    $region23: #{baseline_encoder_forward.1} parent=1 // pred_check_branch
      %27 = sbr.rel (0) target = $region25
    $region24: #{baseline_encoder_forward.1} parent=1 // pred_region
      _
    $region25: #{baseline_encoder_forward.1} parent=1 // pred_fallthru
      _
    // Predicated region
    $region26: #{baseline_encoder_forward.1} parent=1 // pred_check
      _
    $region27: #{baseline_encoder_forward.1} parent=1 // pred_check_branch
      %29 = sbr.rel (0) target = $region29
    $region28: #{baseline_encoder_forward.1} parent=1 // pred_region
      _
    $region29: #{baseline_encoder_forward.1} parent=1 // pred_fallthru
      _
    // Predicated region
    $region30: #{baseline_encoder_forward.1} parent=1 // pred_check
      _
    $region31: #{baseline_encoder_forward.1} parent=1 // pred_check_branch
      %31 = sbr.rel (0) target = $region33
    $region32: #{baseline_encoder_forward.1} parent=1 // pred_region
      _
    $region33: #{baseline_encoder_forward.1} parent=1 // pred_fallthru
      _
    // Predicated region
    $region34: #{baseline_encoder_forward.1} parent=1 // pred_check
      _
    $region35: #{baseline_encoder_forward.1} parent=1 // pred_check_branch
      %33 = sbr.rel (0) target = $region37
    $region36: #{baseline_encoder_forward.1} parent=1 // pred_region
      _
    $region37: #{baseline_encoder_forward.1} parent=1 // pred_fallthru
      _
    // Predicated region
    $region38: #{baseline_encoder_forward.1} parent=1 // pred_check
      _
    $region39: #{baseline_encoder_forward.1} parent=1 // pred_check_branch
      %35 = sbr.rel (0) target = $region41
    $region40: #{baseline_encoder_forward.1} parent=1 // pred_region
      _
    $region41: #{baseline_encoder_forward.1} parent=1 // pred_fallthru
      _
    %v37 = vld [vmem:[%s9] sm:$0x1]
    %v38 = vld [vmem:[%s9 + $0x1] sm:$0x1]
    %v39 = vld [vmem:[%s9 + $0x2] sm:$0x1]
    %v40 = vld [vmem:[%s9 + $0x3] sm:$0x1]
    %v41 = vld [vmem:[%s0] sm:$0xff]
    %v42 = vld [vmem:[%s0 + $0x8] sm:$0xff]
    %v43 = vld [vmem:[%s3] sm:$0xf]
    %v44 = vld [vmem:[%s3 + $0x4] sm:$0xf]
    %v45 = vld [vmem:[%s3 + $0x8] sm:$0xf]
    %v46 = vld [vmem:[%s3 + $0xc] sm:$0xf]
    %v47 = vld [vmem:[%s3 + $0x10] sm:$0x3]
    %v48 = vpack.c.bf16 %v42, %v41
    %v49 = vlaneseq
    %v50 = vshrl.u32 %v49, 7
    %v51 = vsub.s32 0, %v50
    %v52 = vrot.slane %v37, %v51
    %v58 = vunpack.c.l.b16 %v43
    %v59 = vunpack.c.l.b16 %v44
    %v60 = vunpack.c.l.b16 %v45
    %v61 = vunpack.c.l.b16 %v46
    %v62 = vunpack.c.l.b16 %v47
    %v63 = vpack.c.b16 %v59, %v58
    %v64 = vpack.c.b16 %v61, %v60
    %v65 = vpack.c.b16 %v62, %v62
    %vm68 = vcmask 293888
    %v70 = vsel %vm68, %v48, 0
    %vm72 = vcmask 1041408
    %v74 = vsel %vm72, %v65, 0
    %76 = vmatprep.subr.bf16.mxu0 0
    %77 = vmatpush1.bf16.msra.mxu0 %v63
    %78 = vmatprep.subr.bf16.mxu0 0
    %79 = vmatpush1.bf16.msra.mxu0 %v64
    %80 = vmatprep.subr.bf16.mxu0 0
    %81 = vmatpush1.bf16.msra.mxu0 %v74
    %82 = vmatprep.subr.bf16.mxu0 0
    %83 = vmatpush1.bf16.msra.mxu0 0
    %84 = vmatprep.subr.bf16.mxu0 0
    %85 = vmatpush1.bf16.msra.mxu0 0
    %86 = vmatprep.subr.bf16.mxu0 0
    %87 = vmatpush1.bf16.msra.mxu0 0
    %88 = vmatprep.subr.bf16.mxu0 0
    %89 = vmatpush1.bf16.msra.mxu0 0
    %90 = vmatprep.subr.bf16.mxu0 0
    %91 = vmatpush1.bf16.msra.mxu0 0
    %92 = vmatprep.subr.bf16.mxu0 0
    %93 = vmatpush1.bf16.msra.mxu0 0
    %94 = vmatprep.subr.bf16.mxu0 0
    %95 = vmatpush1.bf16.msra.mxu0 0
    %96 = vmatprep.subr.bf16.mxu0 0
    %97 = vmatpush1.bf16.msra.mxu0 0
    %98 = vmatprep.subr.bf16.mxu0 0
    %99 = vmatpush1.bf16.msra.mxu0 0
    %100 = vmatprep.subr.bf16.mxu0 0
    %101 = vmatpush1.bf16.msra.mxu0 0
    %102 = vmatprep.subr.bf16.mxu0 0
    %103 = vmatpush1.bf16.msra.mxu0 0
    %104 = vmatprep.subr.bf16.mxu0 0
    %105 = vmatpush1.bf16.msra.mxu0 0
    %106 = vmatprep.subr.bf16.mxu0 0
    %107 = vmatpush1.bf16.msra.mxu0 0
    %108 = vmatprep.mubr.bf16.mxu0 0
    %109 = vmatmul.mubr.bf16.gmra.mrb[0].mxu0 %v70
    %v110 = vpop.f32.mrb[0].mxu0
    %v111 = vadd.f32 %v52, %v110
    %v112 = vpop.f32.mrb[0].mxu0
    %v113 = vpop.f32.mrb[0].mxu0
    %v114 = vadd.f32 %v52, %v113
    %v115 = vpop.f32.mrb[0].mxu0
    %116 = vdwg.mxu0
    %vm117 = vcmask 261120
    %v118 = vsel %vm117, %v111, 0.0
    %119 = vadd.xlane.f32.xlu0 %v118
    %v120 = vpop.xlane.xlu0 %119
    %v121 = vsel %vm117, %v114, 0.0
    %122 = vadd.xlane.f32.xlu0 %v121
    %v123 = vpop.xlane.xlu0 %122
    %v124 = vrcp.pop 32.0
    %v125 = vmul.f32 %v120, %v124
    %v126 = vmul.f32 %v123, %v124
    %v127 = vsub.f32 %v111, %v125
    %v128 = vsub.f32 %v114, %v126
    %v129 = vmul.f32 %v127, %v127
    %v130 = vmul.f32 %v128, %v128
    %v131 = vsel %vm117, %v129, 0.0
    %132 = vadd.xlane.f32.xlu0 %v131
    %v133 = vpop.xlane.xlu0 %132
    %v134 = vsel %vm117, %v130, 0.0
    %135 = vadd.xlane.f32.xlu0 %v134
    %v136 = vpop.xlane.xlu0 %135
    %v137 = vmul.f32 %v133, %v124
    %v138 = vmul.f32 %v136, %v124
    %v139 = vadd.f32 %v137, 1e-05
    %v140 = vadd.f32 %v138, 1e-05
    %v141 = vrsqrt.pop %v139
    %v142 = vrsqrt.pop %v140
    %v143 = vmul.f32 %v127, %v141
    %v144 = vmul.f32 %v128, %v142
    %v145 = vlaneseq
    %v146 = vshrl.u32 %v145, 7
    %v147 = vsub.s32 0, %v146
    %v148 = vrot.slane %v38, %v147
    %v149 = vmul.f32 %v143, %v148
    %v150 = vmul.f32 %v144, %v148
    %v151 = vlaneseq
    %v152 = vshrl.u32 %v151, 7
    %v153 = vsub.s32 0, %v152
    %v154 = vrot.slane %v39, %v153
    %v155 = vadd.f32 %v149, %v154
    %v156 = vadd.f32 %v150, %v154
    %v157 = vmax.f32 %v155, 0.0
    %v158 = vmax.f32 %v156, 0.0
    %v159 = vlaneseq
    %v160 = vshrl.u32 %v159, 7
    %v161 = vsub.s32 0, %v160
    %v162 = vrot.slane %v40, %v161
    %v163 = vmul.f32 %v157, %v162
    %v164 = vmul.f32 %v158, %v162
    %v165 = vsel %vm117, %v163, 0.0
    %166 = vadd.xlane.f32.xlu0 %v165
    %v167 = vpop.xlane.xlu0 %166
    %v168 = vsel %vm117, %v164, 0.0
    %169 = vadd.xlane.f32.xlu0 %v168
    %v170 = vpop.xlane.xlu0 %169
    %v171 = vrot.slane %v167, 4
    %v172 = vmax.f32 %v167, %v171
    %v173 = vrot.slane %v172, 2
    %v174 = vmax.f32 %v172, %v173
    %v175 = vrot.slane %v174, 1
    %v176 = vmax.f32 %v174, %v175
    %v177 = vrot.slane %v170, 4
    %v178 = vmax.f32 %v170, %v177
    %v179 = vrot.slane %v178, 2
    %v180 = vmax.f32 %v178, %v179
    %v181 = vrot.slane %v180, 1
    %v182 = vmax.f32 %v180, %v181
    %v183 = vsub.f32 %v167, %v176
    %v184 = vsub.f32 %v170, %v182
    %v185 = vmul.f32 %v183, 1.442695
    %v186 = vpow.pop %v185
    %v187 = vmul.f32 %v184, 1.442695
    %v188 = vpow.pop %v187
    %v189 = vrot.slane %v186, 4
    %v190 = vadd.f32 %v186, %v189
    %v191 = vrot.slane %v190, 2
    %v192 = vadd.f32 %v190, %v191
    %v193 = vrot.slane %v192, 1
    %v194 = vadd.f32 %v192, %v193
    %v195 = vrot.slane %v188, 4
    %v196 = vadd.f32 %v188, %v195
    %v197 = vrot.slane %v196, 2
    %v198 = vadd.f32 %v196, %v197
    %v199 = vrot.slane %v198, 1
    %v200 = vadd.f32 %v198, %v199
    %v201 = vrcp.pop %v194
    %v202 = vmul.f32 %v186, %v201
    %v203 = vrcp.pop %v200
    %v204 = vmul.f32 %v188, %v203
    %v205 = vmul.f32 %v202, %v111
    %v206 = vmul.f32 %v204, %v114
    %v207 = vsel %vm117, %v205, 0.0
    %v208 = vrot.slane %v207, 4
    %v209 = vadd.f32 %v207, %v208
    %v210 = vrot.slane %v209, 2
    %v211 = vadd.f32 %v209, %v210
    %v212 = vrot.slane %v211, 1
    %v213 = vadd.f32 %v211, %v212
    %v214 = vsel %vm117, %v206, 0.0
    %v215 = vrot.slane %v214, 4
    %v216 = vadd.f32 %v214, %v215
    %v217 = vrot.slane %v216, 2
    %v218 = vadd.f32 %v216, %v217
    %v219 = vrot.slane %v218, 1
    %v220 = vadd.f32 %v218, %v219
    %v221 = vld [vmem:[%s1] sm:$0xf]
    %v222 = vld [vmem:[%s4] sm:$0xf]
    %v223 = vld [vmem:[%s4 + $0x4] sm:$0xf]
    %v224 = vld [vmem:[%s4 + $0x8] sm:$0xf]
    %v225 = vld [vmem:[%s4 + $0xc] sm:$0xf]
    %v226 = vld [vmem:[%s4 + $0x10] sm:$0xf]
    %v227 = vld [vmem:[%s4 + $0x14] sm:$0xf]
    %v228 = vld [vmem:[%s4 + $0x18] sm:$0xf]
    %v229 = vld [vmem:[%s4 + $0x1c] sm:$0xf]
    %v230 = vld [vmem:[%s4 + $0x20] sm:$0xf]
    %v231 = vld [vmem:[%s4 + $0x24] sm:$0xf]
    %v232 = vld [vmem:[%s4 + $0x28] sm:$0xf]
    %v233 = vld [vmem:[%s4 + $0x2c] sm:$0xf]
    %v234 = vld [vmem:[%s4 + $0x30] sm:$0xf]
    %v235 = vld [vmem:[%s4 + $0x34] sm:$0xf]
    %v236 = vld [vmem:[%s4 + $0x38] sm:$0xf]
    %v237 = vld [vmem:[%s4 + $0x3c] sm:$0xf]
    %v238 = vld [vmem:[%s4 + $0x40] sm:$0xf]
    %v239 = vld [vmem:[%s4 + $0x44] sm:$0xf]
    %v240 = vld [vmem:[%s4 + $0x48] sm:$0xf]
    %v241 = vld [vmem:[%s4 + $0x4c] sm:$0xf]
    %v242 = vld [vmem:[%s4 + $0x50] sm:$0xf]
    %v243 = vld [vmem:[%s4 + $0x54] sm:$0xf]
    %v244 = vld [vmem:[%s4 + $0x58] sm:$0xf]
    %v245 = vld [vmem:[%s4 + $0x5c] sm:$0xf]
    %v246 = vld [vmem:[%s4 + $0x60] sm:$0xf]
    %v247 = vld [vmem:[%s4 + $0x64] sm:$0xf]
    %v248 = vld [vmem:[%s4 + $0x68] sm:$0xf]
    %v249 = vld [vmem:[%s4 + $0x6c] sm:$0xf]
    %v250 = vld [vmem:[%s4 + $0x70] sm:$0xf]
    %v251 = vld [vmem:[%s4 + $0x74] sm:$0xf]
    %v252 = vld [vmem:[%s4 + $0x78] sm:$0xf]
    %v253 = vld [vmem:[%s4 + $0x7c] sm:$0xf]
    %v256 = vunpack.c.l.s4 1983009808
    %v257 = vunpack.c.0.s8 %v256
    %v258 = vlaneseq
    %v259 = vshrl.u32 %v258, 7
    %v260 = vsub.s32 %v257, %v259
    %v261 = vrot.slane %v221, %v260
    %v262 = vcombine.high %v261, %v261
    %v265 = vpack.c.bf16 %v261, %v261
    %v266 = vpack.c.bf16 %v262, %v262
    %v267 = vld [vmem:[%s9 + $0x4] sm:$0x1]
    %v268 = vlaneseq
    %v269 = vshrl.u32 %v268, 7
    %v270 = vsub.s32 0, %v269
    %v271 = vrot.slane %v267, %v270
    %v304 = vunpack.c.l.b16 %v222
    %v305 = vunpack.c.l.b16 %v223
    %v306 = vunpack.c.l.b16 %v224
    %v307 = vunpack.c.l.b16 %v225
    %v308 = vunpack.c.l.b16 %v226
    %v309 = vunpack.c.l.b16 %v227
    %v310 = vunpack.c.l.b16 %v228
    %v311 = vunpack.c.l.b16 %v229
    %v312 = vunpack.c.l.b16 %v230
    %v313 = vunpack.c.l.b16 %v231
    %v314 = vunpack.c.l.b16 %v232
    %v315 = vunpack.c.l.b16 %v233
    %v316 = vunpack.c.l.b16 %v234
    %v317 = vunpack.c.l.b16 %v235
    %v318 = vunpack.c.l.b16 %v236
    %v319 = vunpack.c.l.b16 %v237
    %v320 = vunpack.c.l.b16 %v238
    %v321 = vunpack.c.l.b16 %v239
    %v322 = vunpack.c.l.b16 %v240
    %v323 = vunpack.c.l.b16 %v241
    %v324 = vunpack.c.l.b16 %v242
    %v325 = vunpack.c.l.b16 %v243
    %v326 = vunpack.c.l.b16 %v244
    %v327 = vunpack.c.l.b16 %v245
    %v328 = vunpack.c.l.b16 %v246
    %v329 = vunpack.c.l.b16 %v247
    %v330 = vunpack.c.l.b16 %v248
    %v331 = vunpack.c.l.b16 %v249
    %v332 = vunpack.c.l.b16 %v250
    %v333 = vunpack.c.l.b16 %v251
    %v334 = vunpack.c.l.b16 %v252
    %v335 = vunpack.c.l.b16 %v253
    %v336 = vpack.c.b16 %v305, %v304
    %v337 = vpack.c.b16 %v307, %v306
    %v338 = vpack.c.b16 %v309, %v308
    %v339 = vpack.c.b16 %v311, %v310
    %v340 = vpack.c.b16 %v313, %v312
    %v341 = vpack.c.b16 %v315, %v314
    %v342 = vpack.c.b16 %v317, %v316
    %v343 = vpack.c.b16 %v319, %v318
    %v344 = vpack.c.b16 %v321, %v320
    %v345 = vpack.c.b16 %v323, %v322
    %v346 = vpack.c.b16 %v325, %v324
    %v347 = vpack.c.b16 %v327, %v326
    %v348 = vpack.c.b16 %v329, %v328
    %v349 = vpack.c.b16 %v331, %v330
    %v350 = vpack.c.b16 %v333, %v332
    %v351 = vpack.c.b16 %v335, %v334
    %368 = vmatprep.subr.bf16.mxu0 0
    %369 = vmatpush1.bf16.msra.mxu0 %v336
    %370 = vmatprep.subr.bf16.mxu0 0
    %371 = vmatpush1.bf16.msra.mxu0 %v337
    %372 = vmatprep.subr.bf16.mxu0 0
    %373 = vmatpush1.bf16.msra.mxu0 %v338
    %374 = vmatprep.subr.bf16.mxu0 0
    %375 = vmatpush1.bf16.msra.mxu0 %v339
    %376 = vmatprep.subr.bf16.mxu0 0
    %377 = vmatpush1.bf16.msra.mxu0 %v340
    %378 = vmatprep.subr.bf16.mxu0 0
    %379 = vmatpush1.bf16.msra.mxu0 %v341
    %380 = vmatprep.subr.bf16.mxu0 0
    %381 = vmatpush1.bf16.msra.mxu0 %v342
    %382 = vmatprep.subr.bf16.mxu0 0
    %383 = vmatpush1.bf16.msra.mxu0 %v343
    %384 = vmatprep.subr.bf16.mxu0 0
    %385 = vmatpush1.bf16.msra.mxu0 %v344
    %386 = vmatprep.subr.bf16.mxu0 0
    %387 = vmatpush1.bf16.msra.mxu0 %v345
    %388 = vmatprep.subr.bf16.mxu0 0
    %389 = vmatpush1.bf16.msra.mxu0 %v346
    %390 = vmatprep.subr.bf16.mxu0 0
    %391 = vmatpush1.bf16.msra.mxu0 %v347
    %392 = vmatprep.subr.bf16.mxu0 0
    %393 = vmatpush1.bf16.msra.mxu0 %v348
    %394 = vmatprep.subr.bf16.mxu0 0
    %395 = vmatpush1.bf16.msra.mxu0 %v349
    %396 = vmatprep.subr.bf16.mxu0 0
    %397 = vmatpush1.bf16.msra.mxu0 %v350
    %398 = vmatprep.subr.bf16.mxu0 0
    %399 = vmatpush1.bf16.msra.mxu0 %v351
    %400 = vmatprep.mubr.bf16.mxu0 %v266
    %401 = vmatmul.mubr.bf16.gmra.mrb[0].mxu0 %v265
    %v402 = vpop.f32.mrb[0].mxu0
    %v403 = vadd.f32 %v271, %v402
    %v404 = vpop.f32.mrb[0].mxu0
    %v405 = vpop.f32.mrb[0].mxu0
    %v406 = vpop.f32.mrb[0].mxu0
    %407 = vdwg.mxu0
    %v408 = vmax.f32 %v403, 0.0
    %v409 = vld [vmem:[%s5] sm:$0xf]
    %v410 = vld [vmem:[%s5 + $0x4] sm:$0xf]
    %v411 = vld [vmem:[%s5 + $0x8] sm:$0xf]
    %v412 = vld [vmem:[%s5 + $0xc] sm:$0xf]
    %v413 = vld [vmem:[%s5 + $0x10] sm:$0xf]
    %v414 = vld [vmem:[%s5 + $0x14] sm:$0xf]
    %v415 = vld [vmem:[%s5 + $0x18] sm:$0xf]
    %v416 = vld [vmem:[%s5 + $0x1c] sm:$0xf]
    %v417 = vpack.c.bf16 %v408, %v408
    %v418 = vld [vmem:[%s9 + $0x5] sm:$0x1]
    %v419 = vlaneseq
    %v420 = vshrl.u32 %v419, 7
    %v421 = vsub.s32 0, %v420
    %v422 = vrot.slane %v418, %v421
    %v431 = vunpack.c.l.b16 %v409
    %v432 = vunpack.c.l.b16 %v410
    %v433 = vunpack.c.l.b16 %v411
    %v434 = vunpack.c.l.b16 %v412
    %v435 = vunpack.c.l.b16 %v413
    %v436 = vunpack.c.l.b16 %v414
    %v437 = vunpack.c.l.b16 %v415
    %v438 = vunpack.c.l.b16 %v416
    %v439 = vpack.c.b16 %v432, %v431
    %v440 = vpack.c.b16 %v434, %v433
    %v441 = vpack.c.b16 %v436, %v435
    %v442 = vpack.c.b16 %v438, %v437
    %vm447 = vcmask 523264
    %v449 = vsel %vm447, %v417, 0
    %451 = vmatprep.subr.bf16.mxu0 0
    %452 = vmatpush1.bf16.msra.mxu0 %v439
    %453 = vmatprep.subr.bf16.mxu0 0
    %454 = vmatpush1.bf16.msra.mxu0 %v440
    %455 = vmatprep.subr.bf16.mxu0 0
    %456 = vmatpush1.bf16.msra.mxu0 %v441
    %457 = vmatprep.subr.bf16.mxu0 0
    %458 = vmatpush1.bf16.msra.mxu0 %v442
    %459 = vmatprep.subr.bf16.mxu0 0
    %460 = vmatpush1.bf16.msra.mxu0 0
    %461 = vmatprep.subr.bf16.mxu0 0
    %462 = vmatpush1.bf16.msra.mxu0 0
    %463 = vmatprep.subr.bf16.mxu0 0
    %464 = vmatpush1.bf16.msra.mxu0 0
    %465 = vmatprep.subr.bf16.mxu0 0
    %466 = vmatpush1.bf16.msra.mxu0 0
    %467 = vmatprep.subr.bf16.mxu0 0
    %468 = vmatpush1.bf16.msra.mxu0 0
    %469 = vmatprep.subr.bf16.mxu0 0
    %470 = vmatpush1.bf16.msra.mxu0 0
    %471 = vmatprep.subr.bf16.mxu0 0
    %472 = vmatpush1.bf16.msra.mxu0 0
    %473 = vmatprep.subr.bf16.mxu0 0
    %474 = vmatpush1.bf16.msra.mxu0 0
    %475 = vmatprep.subr.bf16.mxu0 0
    %476 = vmatpush1.bf16.msra.mxu0 0
    %477 = vmatprep.subr.bf16.mxu0 0
    %478 = vmatpush1.bf16.msra.mxu0 0
    %479 = vmatprep.subr.bf16.mxu0 0
    %480 = vmatpush1.bf16.msra.mxu0 0
    %481 = vmatprep.subr.bf16.mxu0 0
    %482 = vmatpush1.bf16.msra.mxu0 0
    %483 = vmatprep.mubr.bf16.mxu0 0
    %484 = vmatmul.mubr.bf16.gmra.mrb[0].mxu0 %v449
    %v485 = vpop.f32.mrb[0].mxu0
    %v486 = vadd.f32 %v422, %v485
    %v487 = vpop.f32.mrb[0].mxu0
    %v488 = vpop.f32.mrb[0].mxu0
    %v489 = vpop.f32.mrb[0].mxu0
    %490 = vdwg.mxu0
    %v491 = vmax.f32 %v486, 0.0
    %v492 = vld [vmem:[%s2] sm:$0x3]
    %vm495 = vcmask 1041409
    %v496 = vsel %vm495, %v220, %v213
    %499 = vrot.lane.b32.xlu0 %v491, 32
    %v500 = vpop.permute.xlu0 %499
    %503 = vrot.lane.b32.xlu0 %v492, 64
    %v504 = vpop.permute.xlu0 %503
    %v506 = vsel %vm117, %v496, %v500
    %v507 = vsel %vm447, %v506, %v504
    %v508 = vld [vmem:[%s6] sm:$0xf]
    %v509 = vld [vmem:[%s6 + $0x4] sm:$0xf]
    %v510 = vld [vmem:[%s6 + $0x8] sm:$0xf]
    %v511 = vld [vmem:[%s6 + $0xc] sm:$0xf]
    %v512 = vld [vmem:[%s6 + $0x10] sm:$0xf]
    %v513 = vld [vmem:[%s6 + $0x14] sm:$0xf]
    %v514 = vld [vmem:[%s6 + $0x18] sm:$0xf]
    %v515 = vld [vmem:[%s6 + $0x1c] sm:$0xf]
    %v516 = vld [vmem:[%s6 + $0x20] sm:$0xf]
    %v517 = vld [vmem:[%s6 + $0x24] sm:$0x7]
    %v518 = vpack.c.bf16 %v507, %v507
    %v519 = vld [vmem:[%s9 + $0x6] sm:$0x1]
    %v520 = vlaneseq
    %v521 = vshrl.u32 %v520, 7
    %v522 = vsub.s32 0, %v521
    %v523 = vrot.slane %v519, %v522
    %v534 = vunpack.c.l.b16 %v508
    %v535 = vunpack.c.l.b16 %v509
    %v536 = vunpack.c.l.b16 %v510
    %v537 = vunpack.c.l.b16 %v511
    %v538 = vunpack.c.l.b16 %v512
    %v539 = vunpack.c.l.b16 %v513
    %v540 = vunpack.c.l.b16 %v514
    %v541 = vunpack.c.l.b16 %v515
    %v542 = vunpack.c.l.b16 %v516
    %v543 = vunpack.c.l.b16 %v517
    %v544 = vpack.c.b16 %v535, %v534
    %v545 = vpack.c.b16 %v537, %v536
    %v546 = vpack.c.b16 %v539, %v538
    %v547 = vpack.c.b16 %v541, %v540
    %v548 = vpack.c.b16 %v543, %v542
    %vm553 = vcmask 629760
    %v555 = vsel %vm553, %v518, 0
    %vm557 = vcmask 1045504
    %vm558 = vcmask 1046528
    %v559 = vsel %vm557, 4294967295, 65535
    %v560 = vsel %vm558, %v559, 0
    %v562 = vand.u32 %v548, %v560
    %564 = vmatprep.subr.bf16.mxu0 0
    %565 = vmatpush1.bf16.msra.mxu0 %v544
    %566 = vmatprep.subr.bf16.mxu0 0
    %567 = vmatpush1.bf16.msra.mxu0 %v545
    %568 = vmatprep.subr.bf16.mxu0 0
    %569 = vmatpush1.bf16.msra.mxu0 %v546
    %570 = vmatprep.subr.bf16.mxu0 0
    %571 = vmatpush1.bf16.msra.mxu0 %v547
    %572 = vmatprep.subr.bf16.mxu0 0
    %573 = vmatpush1.bf16.msra.mxu0 %v562
    %574 = vmatprep.subr.bf16.mxu0 0
    %575 = vmatpush1.bf16.msra.mxu0 0
    %576 = vmatprep.subr.bf16.mxu0 0
    %577 = vmatpush1.bf16.msra.mxu0 0
    %578 = vmatprep.subr.bf16.mxu0 0
    %579 = vmatpush1.bf16.msra.mxu0 0
    %580 = vmatprep.subr.bf16.mxu0 0
    %581 = vmatpush1.bf16.msra.mxu0 0
    %582 = vmatprep.subr.bf16.mxu0 0
    %583 = vmatpush1.bf16.msra.mxu0 0
    %584 = vmatprep.subr.bf16.mxu0 0
    %585 = vmatpush1.bf16.msra.mxu0 0
    %586 = vmatprep.subr.bf16.mxu0 0
    %587 = vmatpush1.bf16.msra.mxu0 0
    %588 = vmatprep.subr.bf16.mxu0 0
    %589 = vmatpush1.bf16.msra.mxu0 0
    %590 = vmatprep.subr.bf16.mxu0 0
    %591 = vmatpush1.bf16.msra.mxu0 0
    %592 = vmatprep.subr.bf16.mxu0 0
    %593 = vmatpush1.bf16.msra.mxu0 0
    %594 = vmatprep.subr.bf16.mxu0 0
    %595 = vmatpush1.bf16.msra.mxu0 0
    %596 = vmatprep.mubr.bf16.mxu0 0
    %597 = vmatmul.mubr.bf16.gmra.mrb[0].mxu0 %v555
    %v598 = vpop.f32.mrb[0].mxu0
    %v599 = vadd.f32 %v523, %v598
    %v600 = vpop.f32.mrb[0].mxu0
    %v601 = vpop.f32.mrb[0].mxu0
    %v602 = vpop.f32.mrb[0].mxu0
    %603 = vdwg.mxu0
    %v604 = vmax.f32 %v599, 0.0
    %v605 = vld [vmem:[%s7] sm:$0xf]
    %v606 = vld [vmem:[%s7 + $0x4] sm:$0xf]
    %v607 = vld [vmem:[%s7 + $0x8] sm:$0xf]
    %v608 = vld [vmem:[%s7 + $0xc] sm:$0xf]
    %v609 = vld [vmem:[%s7 + $0x10] sm:$0xf]
    %v610 = vld [vmem:[%s7 + $0x14] sm:$0xf]
    %v611 = vld [vmem:[%s7 + $0x18] sm:$0xf]
    %v612 = vld [vmem:[%s7 + $0x1c] sm:$0xf]
    %v613 = vpack.c.bf16 %v604, %v604
    %v614 = vld [vmem:[%s9 + $0x7] sm:$0x1]
    %v615 = vlaneseq
    %v616 = vshrl.u32 %v615, 7
    %v617 = vsub.s32 0, %v616
    %v618 = vrot.slane %v614, %v617
    %v627 = vunpack.c.l.b16 %v605
    %v628 = vunpack.c.l.b16 %v606
    %v629 = vunpack.c.l.b16 %v607
    %v630 = vunpack.c.l.b16 %v608
    %v631 = vunpack.c.l.b16 %v609
    %v632 = vunpack.c.l.b16 %v610
    %v633 = vunpack.c.l.b16 %v611
    %v634 = vunpack.c.l.b16 %v612
    %v635 = vpack.c.b16 %v628, %v627
    %v636 = vpack.c.b16 %v630, %v629
    %v637 = vpack.c.b16 %v632, %v631
    %v638 = vpack.c.b16 %v634, %v633
    %v644 = vsel %vm447, %v613, 0
    %646 = vmatprep.subr.bf16.mxu0 0
    %647 = vmatpush1.bf16.msra.mxu0 %v635
    %648 = vmatprep.subr.bf16.mxu0 0
    %649 = vmatpush1.bf16.msra.mxu0 %v636
    %650 = vmatprep.subr.bf16.mxu0 0
    %651 = vmatpush1.bf16.msra.mxu0 %v637
    %652 = vmatprep.subr.bf16.mxu0 0
    %653 = vmatpush1.bf16.msra.mxu0 %v638
    %654 = vmatprep.subr.bf16.mxu0 0
    %655 = vmatpush1.bf16.msra.mxu0 0
    %656 = vmatprep.subr.bf16.mxu0 0
    %657 = vmatpush1.bf16.msra.mxu0 0
    %658 = vmatprep.subr.bf16.mxu0 0
    %659 = vmatpush1.bf16.msra.mxu0 0
    %660 = vmatprep.subr.bf16.mxu0 0
    %661 = vmatpush1.bf16.msra.mxu0 0
    %662 = vmatprep.subr.bf16.mxu0 0
    %663 = vmatpush1.bf16.msra.mxu0 0
    %664 = vmatprep.subr.bf16.mxu0 0
    %665 = vmatpush1.bf16.msra.mxu0 0
    %666 = vmatprep.subr.bf16.mxu0 0
    %667 = vmatpush1.bf16.msra.mxu0 0
    %668 = vmatprep.subr.bf16.mxu0 0
    %669 = vmatpush1.bf16.msra.mxu0 0
    %670 = vmatprep.subr.bf16.mxu0 0
    %671 = vmatpush1.bf16.msra.mxu0 0
    %672 = vmatprep.subr.bf16.mxu0 0
    %673 = vmatpush1.bf16.msra.mxu0 0
    %674 = vmatprep.subr.bf16.mxu0 0
    %675 = vmatpush1.bf16.msra.mxu0 0
    %676 = vmatprep.subr.bf16.mxu0 0
    %677 = vmatpush1.bf16.msra.mxu0 0
    %678 = vmatprep.mubr.bf16.mxu0 0
    %679 = vmatmul.mubr.bf16.gmra.mrb[0].mxu0 %v644
    %v680 = vpop.f32.mrb[0].mxu0
    %v681 = vadd.f32 %v618, %v680
    %v682 = vpop.f32.mrb[0].mxu0
    %v683 = vpop.f32.mrb[0].mxu0
    %v684 = vpop.f32.mrb[0].mxu0
    %685 = vdwg.mxu0
    %v686 = vmax.f32 %v681, 0.0
    %v687 = vld [vmem:[%s7 + $0x20] sm:$0xf]
    %v688 = vld [vmem:[%s7 + $0x24] sm:$0xf]
    %v689 = vld [vmem:[%s7 + $0x28] sm:$0xf]
    %v690 = vld [vmem:[%s7 + $0x2c] sm:$0xf]
    %v691 = vld [vmem:[%s7 + $0x30] sm:$0xf]
    %v692 = vld [vmem:[%s7 + $0x34] sm:$0xf]
    %v693 = vld [vmem:[%s7 + $0x38] sm:$0xf]
    %v694 = vld [vmem:[%s7 + $0x3c] sm:$0xf]
    %v695 = vpack.c.bf16 %v686, %v686
    %v696 = vld [vmem:[%s9 + $0x8] sm:$0x1]
    %v697 = vlaneseq
    %v698 = vshrl.u32 %v697, 7
    %v699 = vsub.s32 0, %v698
    %v700 = vrot.slane %v696, %v699
    %v709 = vunpack.c.l.b16 %v687
    %v710 = vunpack.c.l.b16 %v688
    %v711 = vunpack.c.l.b16 %v689
    %v712 = vunpack.c.l.b16 %v690
    %v713 = vunpack.c.l.b16 %v691
    %v714 = vunpack.c.l.b16 %v692
    %v715 = vunpack.c.l.b16 %v693
    %v716 = vunpack.c.l.b16 %v694
    %v717 = vpack.c.b16 %v710, %v709
    %v718 = vpack.c.b16 %v712, %v711
    %v719 = vpack.c.b16 %v714, %v713
    %v720 = vpack.c.b16 %v716, %v715
    %v726 = vsel %vm447, %v695, 0
    %728 = vmatprep.subr.bf16.mxu0 0
    %729 = vmatpush1.bf16.msra.mxu0 %v717
    %730 = vmatprep.subr.bf16.mxu0 0
    %731 = vmatpush1.bf16.msra.mxu0 %v718
    %732 = vmatprep.subr.bf16.mxu0 0
    %733 = vmatpush1.bf16.msra.mxu0 %v719
    %734 = vmatprep.subr.bf16.mxu0 0
    %735 = vmatpush1.bf16.msra.mxu0 %v720
    %736 = vmatprep.subr.bf16.mxu0 0
    %737 = vmatpush1.bf16.msra.mxu0 0
    %738 = vmatprep.subr.bf16.mxu0 0
    %739 = vmatpush1.bf16.msra.mxu0 0
    %740 = vmatprep.subr.bf16.mxu0 0
    %741 = vmatpush1.bf16.msra.mxu0 0
    %742 = vmatprep.subr.bf16.mxu0 0
    %743 = vmatpush1.bf16.msra.mxu0 0
    %744 = vmatprep.subr.bf16.mxu0 0
    %745 = vmatpush1.bf16.msra.mxu0 0
    %746 = vmatprep.subr.bf16.mxu0 0
    %747 = vmatpush1.bf16.msra.mxu0 0
    %748 = vmatprep.subr.bf16.mxu0 0
    %749 = vmatpush1.bf16.msra.mxu0 0
    %750 = vmatprep.subr.bf16.mxu0 0
    %751 = vmatpush1.bf16.msra.mxu0 0
    %752 = vmatprep.subr.bf16.mxu0 0
    %753 = vmatpush1.bf16.msra.mxu0 0
    %754 = vmatprep.subr.bf16.mxu0 0
    %755 = vmatpush1.bf16.msra.mxu0 0
    %756 = vmatprep.subr.bf16.mxu0 0
    %757 = vmatpush1.bf16.msra.mxu0 0
    %758 = vmatprep.subr.bf16.mxu0 0
    %759 = vmatpush1.bf16.msra.mxu0 0
    %760 = vmatprep.mubr.bf16.mxu0 0
    %761 = vmatmul.mubr.bf16.gmra.mrb[0].mxu0 %v726
    %v762 = vpop.f32.mrb[0].mxu0
    %v763 = vadd.f32 %v700, %v762
    %v764 = vpop.f32.mrb[0].mxu0
    %v765 = vpop.f32.mrb[0].mxu0
    %v766 = vpop.f32.mrb[0].mxu0
    %767 = vdwg.mxu0
    %v768 = vadd.f32 %v763, %v604
    %v769 = vmax.f32 %v768, 0.0
    %v770 = vsel %vm447, %v769, %v604
    %v771 = vld [vmem:[%s8] sm:$0xf]
    %v772 = vld [vmem:[%s8 + $0x4] sm:$0xf]
    %v773 = vld [vmem:[%s8 + $0x8] sm:$0xf]
    %v774 = vld [vmem:[%s8 + $0xc] sm:$0xf]
    %v775 = vld [vmem:[%s8 + $0x10] sm:$0xf]
    %v776 = vld [vmem:[%s8 + $0x14] sm:$0xf]
    %v777 = vld [vmem:[%s8 + $0x18] sm:$0xf]
    %v778 = vld [vmem:[%s8 + $0x1c] sm:$0xf]
    %v779 = vld [vmem:[%s8 + $0x20] sm:$0xf]
    %v780 = vld [vmem:[%s8 + $0x24] sm:$0xf]
    %v781 = vpack.c.bf16 %v770, %v770
    %v782 = vld [vmem:[%s9 + $0x9] sm:$0x1]
    %v783 = vlaneseq
    %v784 = vshrl.u32 %v783, 7
    %v785 = vsub.s32 0, %v784
    %v786 = vrot.slane %v782, %v785
    %v797 = vunpack.c.l.b16 %v771
    %v798 = vunpack.c.l.b16 %v772
    %v799 = vunpack.c.l.b16 %v773
    %v800 = vunpack.c.l.b16 %v774
    %v801 = vunpack.c.l.b16 %v775
    %v802 = vunpack.c.l.b16 %v776
    %v803 = vunpack.c.l.b16 %v777
    %v804 = vunpack.c.l.b16 %v778
    %v805 = vunpack.c.l.b16 %v779
    %v806 = vunpack.c.l.b16 %v780
    %v807 = vpack.c.b16 %v798, %v797
    %v808 = vpack.c.b16 %v800, %v799
    %v809 = vpack.c.b16 %v802, %v801
    %v810 = vpack.c.b16 %v804, %v803
    %v811 = vpack.c.b16 %v806, %v805
    %vm817 = vcmask 654336
    %v819 = vsel %vm817, %v781, 0
    %821 = vmatprep.subr.bf16.mxu0 0
    %822 = vmatpush1.bf16.msra.mxu0 %v807
    %823 = vmatprep.subr.bf16.mxu0 0
    %824 = vmatpush1.bf16.msra.mxu0 %v808
    %825 = vmatprep.subr.bf16.mxu0 0
    %826 = vmatpush1.bf16.msra.mxu0 %v809
    %827 = vmatprep.subr.bf16.mxu0 0
    %828 = vmatpush1.bf16.msra.mxu0 %v810
    %829 = vmatprep.subr.bf16.mxu0 0
    %830 = vmatpush1.bf16.msra.mxu0 %v811
    %831 = vmatprep.subr.bf16.mxu0 0
    %832 = vmatpush1.bf16.msra.mxu0 0
    %833 = vmatprep.subr.bf16.mxu0 0
    %834 = vmatpush1.bf16.msra.mxu0 0
    %835 = vmatprep.subr.bf16.mxu0 0
    %836 = vmatpush1.bf16.msra.mxu0 0
    %837 = vmatprep.subr.bf16.mxu0 0
    %838 = vmatpush1.bf16.msra.mxu0 0
    %839 = vmatprep.subr.bf16.mxu0 0
    %840 = vmatpush1.bf16.msra.mxu0 0
    %841 = vmatprep.subr.bf16.mxu0 0
    %842 = vmatpush1.bf16.msra.mxu0 0
    %843 = vmatprep.subr.bf16.mxu0 0
    %844 = vmatpush1.bf16.msra.mxu0 0
    %845 = vmatprep.subr.bf16.mxu0 0
    %846 = vmatpush1.bf16.msra.mxu0 0
    %847 = vmatprep.subr.bf16.mxu0 0
    %848 = vmatpush1.bf16.msra.mxu0 0
    %849 = vmatprep.subr.bf16.mxu0 0
    %850 = vmatpush1.bf16.msra.mxu0 0
    %851 = vmatprep.subr.bf16.mxu0 0
    %852 = vmatpush1.bf16.msra.mxu0 0
    %853 = vmatprep.mubr.bf16.mxu0 0
    %854 = vmatmul.mubr.bf16.gmra.mrb[0].mxu0 %v819
    %v855 = vpop.f32.mrb[0].mxu0
    %v856 = vadd.f32 %v786, %v855
    %v857 = vpop.f32.mrb[0].mxu0
    %v858 = vpop.f32.mrb[0].mxu0
    %v859 = vpop.f32.mrb[0].mxu0
    %860 = vdwg.mxu0
    %v861 = vlaneseq
    %v862 = vand.u32 %v861, 127
    %vm863 = vcmp.lt.s32.totalorder %v862, 48
    %v864 = vmax.f32 %v856, 0.0
    %v865 = vsel %vm863, %v864, %v856
    %vm866 = vcmask 451584
    %867 = vst.msk [vmem:[#allocation2] sm:$0x3] %vm866, %v865
    // Predicated region
    $region42: #{baseline_encoder_forward.1} parent=1 // pred_check
      _
    $region43: #{baseline_encoder_forward.1} parent=1 // pred_check_branch
      %869 = sbr.rel (0) target = $region45
    $region44: #{baseline_encoder_forward.1} parent=1 // pred_region
      %s871 = ssub.s32 32, 32
      %872 = vsyncadd [#allocation3], %s871
      %s874 = sshll.u32 [#allocation2], 4
      %s875 = int_to_ptr.vmem [resolvable:$true] %s874
      %877 = dma.vmem_to_hbm [thread:$0]  %s875, 32, %s10, [#allocation3]
    $region45: #{baseline_encoder_forward.1} parent=1 // pred_fallthru
      _
    // Predicated region
    $region46: #{baseline_encoder_forward.1} parent=1 // pred_check
      _
    $region47: #{baseline_encoder_forward.1} parent=1 // pred_check_branch
      %879 = sbr.rel (0) target = $region49
    $region48: #{baseline_encoder_forward.1} parent=1 // pred_region
      %880 = dma.done [#allocation3], 32
    $region49: #{baseline_encoder_forward.1} parent=1 // pred_fallthru
      _
    %881 = vsyncpa [#allocation3], 1

</llo_original>
